<compile_context>
chip_gen: v7x
topology: tpu7x:2x2x1
jax: 0.10.0
libtpu: 0.0.40
codegen_flags: <defaults>
</compile_context>

<pallas_src>
import functools

import jax
import jax.numpy as jnp
from jax.experimental import pallas as pl
from jax.experimental.pallas import tpu as pltpu


def _dense_conv_kernel(x_ref, w_ref, b_ref, out_ref, *,
                       H, W, Cin, Cout, KH, KW, Nb):
    """Fused same-conv + channel concat for Nb images, spatial on lanes.

    x_ref   : (Nb, Cin, H*W)        flattened NCHW images (lane axis = H*W)
    w_ref   : (Cout, KH*KW*Cin)     im2col-ordered conv weights
    b_ref   : (Cout, 1)             conv bias (f32)
    out_ref : (Nb, 2, Cout, H*W)    [:,0]=conv(x), [:,1]=x  (Cout == Cin)
    """
    ph, pw = KH // 2, KW // 2
    P = H * W

    x = x_ref[...]                                   # (Nb, Cin, P)

    # ---- Hoisted SAME-padding boundary masks (shared by all images & taps).
    pos = jax.lax.broadcasted_iota(jnp.int32, (1, P), 1)
    col = (pos & (W - 1)) if (W & (W - 1)) == 0 else (pos % W)
    row_keep = {dh: (pos >= (-dh) * W) if dh < 0 else (pos < (H - dh) * W)
                for dh in range(-ph, ph + 1) if dh != 0}
    col_keep = {dw: (col >= -dw) if dw < 0 else (col <= (W - 1) - dw)
                for dw in range(-pw, pw + 1) if dw != 0}

    # ---- Build the im2col patch slab: (KH*KW*Cin, Nb*P), batch on lanes.
    taps = []
    for kh in range(KH):
        for kw in range(KW):
            dh, dw = kh - ph, kw - pw
            d = dh * W + dw
            keep = None
            if dh != 0:
                keep = row_keep[dh]
            if dw != 0:
                keep = col_keep[dw] if keep is None else jnp.logical_and(
                    keep, col_keep[dw])
            pieces = []
            for b in range(Nb):
                xb = x[b]                            # (Cin, P)
                # Circular lane rotate; wrapped elements are zeroed by masks.
                t = xb if d == 0 else pltpu.roll(xb, shift=(-d) % P, axis=1)
                if keep is not None:
                    t = jnp.where(keep, t, 0.0)      # zero out-of-image taps
                pieces.append(t)
            taps.append(pieces[0] if Nb == 1 else
                        jnp.concatenate(pieces, axis=1))   # (Cin, Nb*P)
    patches = jnp.concatenate(taps, axis=0)          # (KH*KW*Cin, Nb*P)

    # ---- One lane-dense MXU matmul for the whole step.
    acc = jnp.dot(w_ref[...], patches, preferred_element_type=jnp.float32)
    acc = acc + b_ref[...]                           # (Cout, 1) bcast on lanes

    # ---- Channel concat via two natural stores per image (no sublane pack).
    for b in range(Nb):
        out_ref[b, 0] = acc[:, b * P:(b + 1) * P].astype(out_ref.dtype)
        out_ref[b, 1] = x[b]


def _pick_images_per_step(n):
    """Largest Nb that still leaves >= 2 grid steps (v7x has 2 TensorCores).

    Single-TC chips (v5e/v6e) would prefer Nb = n (one grid step) to remove
    the ~0.35us/step fixed cost entirely; pass images_per_step=n for that.
    """
    if n < 2:
        return max(n, 1)
    for nb in range(n // 2, 0, -1):
        if n % nb == 0:
            return nb
    return 1


def dense_forward(x_nchw, weight, bias, *, images_per_step=None):
    """Dense(Conv2d(C, C, 3, padding=1)) forward.

    x_nchw : (N, C, H, W) float32
    weight : (Cout, Cin, KH, KW) float32   (PyTorch layout)
    bias   : (Cout,) float32
    returns (N, Cout + C, H, W) float32
    """
    N, Cin, H, W = x_nchw.shape
    Cout, Cin_w, KH, KW = weight.shape
    assert Cin_w == Cin and KH % 2 == 1 and KW % 2 == 1
    # Dense's residual contract: module output shape == input shape.  The
    # (N, 2, C, P) two-store output layout relies on Cout == Cin.
    assert Cout == Cin, "Dense expects the wrapped conv to preserve channels"
    P = H * W

    Nb = images_per_step if images_per_step is not None else _pick_images_per_step(N)
    assert N % Nb == 0, "batch must be divisible by images_per_step"

    # Free reshapes only -- no transpose / pad round trip of x through HBM.
    x_flat = x_nchw.reshape(N, Cin, P)
    # im2col weight slab, ordering (kh, kw, ci) to match the kernel's taps.
    w2d = jnp.transpose(weight, (0, 2, 3, 1)).reshape(Cout, KH * KW * Cin)
    b2d = bias.reshape(Cout, 1).astype(jnp.float32)

    kernel = functools.partial(_dense_conv_kernel, H=H, W=W, Cin=Cin,
                               Cout=Cout, KH=KH, KW=KW, Nb=Nb)

    out = pl.pallas_call(
        kernel,
        out_shape=jax.ShapeDtypeStruct((N, 2, Cout, P), x_nchw.dtype),
        grid_spec=pltpu.PrefetchScalarGridSpec(
            num_scalar_prefetch=0,
            grid=(N // Nb,),
            in_specs=[
                pl.BlockSpec((Nb, Cin, P), lambda n: (n, 0, 0)),
                pl.BlockSpec((Cout, KH * KW * Cin), lambda n: (0, 0)),
                pl.BlockSpec((Cout, 1), lambda n: (0, 0)),
            ],
            out_specs=pl.BlockSpec((Nb, 2, Cout, P), lambda n: (n, 0, 0, 0)),
        ),
        compiler_params=pltpu.CompilerParams(
            dimension_semantics=("parallel",)),
    )(x_flat, w2d, b2d)

    # Back to NCHW with channels [conv(x) | x] (free reshape, contiguous dims).
    return out.reshape(N, 2 * Cout, H, W)


def _reference(x_nchw, weight, bias):
    """Pure-JAX reference: conv + channel concat."""
    conv = jax.lax.conv_general_dilated(
        x_nchw, weight, window_strides=(1, 1), padding="SAME",
        dimension_numbers=("NCHW", "OIHW", "NCHW"))
    conv = conv + bias.reshape(1, -1, 1, 1)
    return jnp.concatenate([conv, x_nchw], axis=1)


if __name__ == "__main__":
    key = jax.random.PRNGKey(0)
    kx, kw, kb, kx2 = jax.random.split(key, 4)

    N, C, H, W = 2, 4, 16, 16
    KH = KW = 3

    x = jax.random.normal(kx, (N, C, H, W), dtype=jnp.float32)
    # Deterministic Conv2d-style init (kaiming-uniform-ish bound).
    fan_in = C * KH * KW
    bound = 1.0 / (fan_in ** 0.5)
    weight = jax.random.uniform(kw, (C, C, KH, KW), jnp.float32, -bound, bound)
    bias = jax.random.uniform(kb, (C,), jnp.float32, -bound, bound)

    # Path 1: N=2 -> 2 parallel grid steps (one image each).
    out = jax.block_until_ready(dense_forward(x, weight, bias))
    ref = jax.block_until_ready(_reference(x, weight, bias))
    assert out.shape == (N, 2 * C, H, W), out.shape
    assert jnp.allclose(out, ref, atol=1e-5, rtol=1e-5), "mismatch vs reference"

    # Path 2: N=4 -> 2 parallel grid steps, 2 images lane-folded per step.
    x4 = jax.random.normal(kx2, (4, C, H, W), dtype=jnp.float32)
    out4 = jax.block_until_ready(dense_forward(x4, weight, bias))
    ref4 = jax.block_until_ready(_reference(x4, weight, bias))
    assert out4.shape == (4, 2 * C, H, W), out4.shape
    assert jnp.allclose(out4, ref4, atol=1e-5, rtol=1e-5), "mismatch (batched)"

    print("KERNEL_OK")
</pallas_src>

<mosaic_0001>
module attributes {stable_mosaic.version = 11 : i64} {
  func.func @_dense_conv_kernel(%arg0: i32, %arg1: memref<1x4x256xf32, #tpu.memory_space<vmem>>, %arg2: memref<4x36xf32, #tpu.memory_space<vmem>>, %arg3: memref<4x1xf32, #tpu.memory_space<vmem>>, %arg4: memref<1x2x4x256xf32, #tpu.memory_space<vmem>>) attributes {dimension_semantics = [#tpu.dimension_semantics<parallel>], iteration_bounds = array<i64: 2>, scalar_prefetch = 0 : i64, scratch_operands = 0 : i64, tpu.core_type = #tpu.core_type<tc>, window_params = [{transform_indices = @transform_0, window_bounds = array<i64: 1, 4, 256>}, {pipeline_mode = #tpu.pipeline_mode<synchronous>, transform_indices = @transform_1, window_bounds = array<i64: 4, 36>}, {pipeline_mode = #tpu.pipeline_mode<synchronous>, transform_indices = @transform_2, window_bounds = array<i64: 4, 1>}, {transform_indices = @transform_3, window_bounds = array<i64: 1, 2, 4, 256>}]} {
    %c0 = arith.constant 0 : index
    %c0_0 = arith.constant 0 : index
    %c0_1 = arith.constant 0 : index
    %0 = vector.load %arg1[%c0, %c0_0, %c0_1] : memref<1x4x256xf32, #tpu.memory_space<vmem>>, vector<1x4x256xf32>
    %1 = tpu.iota {dimensions = array<i32: 1>} : vector<1x256xi32>
    %c15_i32 = arith.constant 15 : i32
    %2 = vector.broadcast %c15_i32 : i32 to vector<1x256xi32>
    %3 = arith.andi %1, %2 : vector<1x256xi32>
    %c16_i32 = arith.constant 16 : i32
    %4 = vector.broadcast %c16_i32 : i32 to vector<1x256xi32>
    %5 = arith.cmpi sge, %1, %4 : vector<1x256xi32>
    %c240_i32 = arith.constant 240 : i32
    %6 = vector.broadcast %c240_i32 : i32 to vector<1x256xi32>
    %7 = arith.cmpi slt, %1, %6 : vector<1x256xi32>
    %c1_i32 = arith.constant 1 : i32
    %8 = vector.broadcast %c1_i32 : i32 to vector<1x256xi32>
    %9 = arith.cmpi sge, %3, %8 : vector<1x256xi32>
    %c14_i32 = arith.constant 14 : i32
    %10 = vector.broadcast %c14_i32 : i32 to vector<1x256xi32>
    %11 = arith.cmpi sle, %3, %10 : vector<1x256xi32>
    %12 = arith.andi %5, %9 : vector<1x256xi1>
    %13 = vector.shape_cast %0 : vector<1x4x256xf32> to vector<4x256xf32>
    %c17_i32 = arith.constant 17 : i32
    %14 = tpu.dynamic_rotate %13 by %c17_i32 dim 1 : vector<4x256xf32>, i32 -> vector<4x256xf32>
    %cst = arith.constant 0.000000e+00 : f32
    %15 = vector.shape_cast %12 : vector<1x256xi1> to vector<1x256xi1>
    %16 = vector.broadcast %15 : vector<1x256xi1> to vector<4x256xi1>
    %17 = vector.broadcast %cst : f32 to vector<4x256xf32>
    %18 = arith.select %16, %14, %17 : vector<4x256xi1>, vector<4x256xf32>
    %19 = vector.shape_cast %0 : vector<1x4x256xf32> to vector<4x256xf32>
    %c16_i32_2 = arith.constant 16 : i32
    %20 = tpu.dynamic_rotate %19 by %c16_i32_2 dim 1 : vector<4x256xf32>, i32 -> vector<4x256xf32>
    %cst_3 = arith.constant 0.000000e+00 : f32
    %21 = vector.shape_cast %5 : vector<1x256xi1> to vector<1x256xi1>
    %22 = vector.broadcast %21 : vector<1x256xi1> to vector<4x256xi1>
    %23 = vector.broadcast %cst_3 : f32 to vector<4x256xf32>
    %24 = arith.select %22, %20, %23 : vector<4x256xi1>, vector<4x256xf32>
    %25 = arith.andi %5, %11 : vector<1x256xi1>
    %26 = vector.shape_cast %0 : vector<1x4x256xf32> to vector<4x256xf32>
    %c15_i32_4 = arith.constant 15 : i32
    %27 = tpu.dynamic_rotate %26 by %c15_i32_4 dim 1 : vector<4x256xf32>, i32 -> vector<4x256xf32>
    %cst_5 = arith.constant 0.000000e+00 : f32
    %28 = vector.shape_cast %25 : vector<1x256xi1> to vector<1x256xi1>
    %29 = vector.broadcast %28 : vector<1x256xi1> to vector<4x256xi1>
    %30 = vector.broadcast %cst_5 : f32 to vector<4x256xf32>
    %31 = arith.select %29, %27, %30 : vector<4x256xi1>, vector<4x256xf32>
    %32 = vector.shape_cast %0 : vector<1x4x256xf32> to vector<4x256xf32>
    %c1_i32_6 = arith.constant 1 : i32
    %33 = tpu.dynamic_rotate %32 by %c1_i32_6 dim 1 : vector<4x256xf32>, i32 -> vector<4x256xf32>
    %cst_7 = arith.constant 0.000000e+00 : f32
    %34 = vector.shape_cast %9 : vector<1x256xi1> to vector<1x256xi1>
    %35 = vector.broadcast %34 : vector<1x256xi1> to vector<4x256xi1>
    %36 = vector.broadcast %cst_7 : f32 to vector<4x256xf32>
    %37 = arith.select %35, %33, %36 : vector<4x256xi1>, vector<4x256xf32>
    %38 = vector.shape_cast %0 : vector<1x4x256xf32> to vector<4x256xf32>
    %39 = vector.shape_cast %0 : vector<1x4x256xf32> to vector<4x256xf32>
    %c255_i32 = arith.constant 255 : i32
    %40 = tpu.dynamic_rotate %39 by %c255_i32 dim 1 : vector<4x256xf32>, i32 -> vector<4x256xf32>
    %cst_8 = arith.constant 0.000000e+00 : f32
    %41 = vector.shape_cast %11 : vector<1x256xi1> to vector<1x256xi1>
    %42 = vector.broadcast %41 : vector<1x256xi1> to vector<4x256xi1>
    %43 = vector.broadcast %cst_8 : f32 to vector<4x256xf32>
    %44 = arith.select %42, %40, %43 : vector<4x256xi1>, vector<4x256xf32>
    %45 = arith.andi %7, %9 : vector<1x256xi1>
    %46 = vector.shape_cast %0 : vector<1x4x256xf32> to vector<4x256xf32>
    %c241_i32 = arith.constant 241 : i32
    %47 = tpu.dynamic_rotate %46 by %c241_i32 dim 1 : vector<4x256xf32>, i32 -> vector<4x256xf32>
    %cst_9 = arith.constant 0.000000e+00 : f32
    %48 = vector.shape_cast %45 : vector<1x256xi1> to vector<1x256xi1>
    %49 = vector.broadcast %48 : vector<1x256xi1> to vector<4x256xi1>
    %50 = vector.broadcast %cst_9 : f32 to vector<4x256xf32>
    %51 = arith.select %49, %47, %50 : vector<4x256xi1>, vector<4x256xf32>
    %52 = vector.shape_cast %0 : vector<1x4x256xf32> to vector<4x256xf32>
    %c240_i32_10 = arith.constant 240 : i32
    %53 = tpu.dynamic_rotate %52 by %c240_i32_10 dim 1 : vector<4x256xf32>, i32 -> vector<4x256xf32>
    %cst_11 = arith.constant 0.000000e+00 : f32
    %54 = vector.shape_cast %7 : vector<1x256xi1> to vector<1x256xi1>
    %55 = vector.broadcast %54 : vector<1x256xi1> to vector<4x256xi1>
    %56 = vector.broadcast %cst_11 : f32 to vector<4x256xf32>
    %57 = arith.select %55, %53, %56 : vector<4x256xi1>, vector<4x256xf32>
    %58 = arith.andi %7, %11 : vector<1x256xi1>
    %59 = vector.shape_cast %0 : vector<1x4x256xf32> to vector<4x256xf32>
    %c239_i32 = arith.constant 239 : i32
    %60 = tpu.dynamic_rotate %59 by %c239_i32 dim 1 : vector<4x256xf32>, i32 -> vector<4x256xf32>
    %cst_12 = arith.constant 0.000000e+00 : f32
    %61 = vector.shape_cast %58 : vector<1x256xi1> to vector<1x256xi1>
    %62 = vector.broadcast %61 : vector<1x256xi1> to vector<4x256xi1>
    %63 = vector.broadcast %cst_12 : f32 to vector<4x256xf32>
    %64 = arith.select %62, %60, %63 : vector<4x256xi1>, vector<4x256xf32>
    %65 = tpu.concatenate %18, %24, %31, %37, %38, %44, %51, %57, %64 in 0 : vector<4x256xf32>, vector<4x256xf32>, vector<4x256xf32>, vector<4x256xf32>, vector<4x256xf32>, vector<4x256xf32>, vector<4x256xf32>, vector<4x256xf32>, vector<4x256xf32> -> vector<36x256xf32>
    %c0_13 = arith.constant 0 : index
    %c0_14 = arith.constant 0 : index
    %66 = vector.load %arg2[%c0_13, %c0_14] : memref<4x36xf32, #tpu.memory_space<vmem>>, vector<4x36xf32>
    %cst_15 = arith.constant dense<0.000000e+00> : vector<4x256xf32>
    %67 = tpu.matmul %66, %65, %cst_15 {dimension_numbers = #tpu.dot_dimension_numbers<[1], [0], [0], [1], [0, 0, 1, 1], [], []>} : vector<4x36xf32>, vector<36x256xf32>, vector<4x256xf32> -> vector<4x256xf32>
    %c0_16 = arith.constant 0 : index
    %c0_17 = arith.constant 0 : index
    %68 = vector.load %arg3[%c0_16, %c0_17] : memref<4x1xf32, #tpu.memory_space<vmem>>, vector<4x1xf32>
    %69 = vector.broadcast %68 : vector<4x1xf32> to vector<4x256xf32>
    %70 = arith.addf %67, %69 : vector<4x256xf32>
    %c0_18 = arith.constant 0 : index
    %c0_19 = arith.constant 0 : index
    %c0_20 = arith.constant 0 : index
    %c0_21 = arith.constant 0 : index
    %71 = vector.load %arg4[%c0_18, %c0_19, %c0_20, %c0_21] : memref<1x2x4x256xf32, #tpu.memory_space<vmem>>, vector<1x1x4x256xf32>
    %72 = vector.shape_cast %71 : vector<1x1x4x256xf32> to vector<4x256xf32>
    %73 = vector.shape_cast %70 : vector<4x256xf32> to vector<1x1x4x256xf32>
    tpu.vector_store %arg4[%c0_18, %c0_19, %c0_20, %c0_21], %73 {strides = array<i32>} : memref<1x2x4x256xf32, #tpu.memory_space<vmem>>, vector<1x1x4x256xf32>,
    %74 = vector.shape_cast %0 : vector<1x4x256xf32> to vector<4x256xf32>
    %c0_22 = arith.constant 0 : index
    %c1 = arith.constant 1 : index
    %c0_23 = arith.constant 0 : index
    %c0_24 = arith.constant 0 : index
    %75 = vector.load %arg4[%c0_22, %c1, %c0_23, %c0_24] : memref<1x2x4x256xf32, #tpu.memory_space<vmem>>, vector<1x1x4x256xf32>
    %76 = vector.shape_cast %75 : vector<1x1x4x256xf32> to vector<4x256xf32>
    %77 = vector.shape_cast %74 : vector<4x256xf32> to vector<1x1x4x256xf32>
    tpu.vector_store %arg4[%c0_22, %c1, %c0_23, %c0_24], %77 {strides = array<i32>} : memref<1x2x4x256xf32, #tpu.memory_space<vmem>>, vector<1x1x4x256xf32>,
    return
  }
  func.func @transform_0(%arg0: i32) -> (i32, i32, i32) {
    %c0_i32 = arith.constant 0 : i32
    %c0_i32_0 = arith.constant 0 : i32
    %c0_i32_1 = arith.constant 0 : i32
    return %arg0, %c0_i32, %c0_i32_0 : i32, i32, i32
  }
  func.func @transform_1(%arg0: i32) -> (i32, i32) {
    %c0_i32 = arith.constant 0 : i32
    %c0_i32_0 = arith.constant 0 : i32
    %c0_i32_1 = arith.constant 0 : i32
    return %c0_i32, %c0_i32_0 : i32, i32
  }
  func.func @transform_2(%arg0: i32) -> (i32, i32) {
    %c0_i32 = arith.constant 0 : i32
    %c0_i32_0 = arith.constant 0 : i32
    %c0_i32_1 = arith.constant 0 : i32
    return %c0_i32, %c0_i32_0 : i32, i32
  }
  func.func @transform_3(%arg0: i32) -> (i32, i32, i32, i32) {
    %c0_i32 = arith.constant 0 : i32
    %c0_i32_0 = arith.constant 0 : i32
    %c0_i32_1 = arith.constant 0 : i32
    %c0_i32_2 = arith.constant 0 : i32
    return %arg0, %c0_i32, %c0_i32_0, %c0_i32_1 : i32, i32, i32, i32
  }
}

</mosaic_0001>

<llo_original>
// kernel: tpu_custom_call.1
$region0: #{tpu_custom_call.1}
  #allocation0 [shape = 'u32[]', space=smem, size = 0x4, offset = 0x4, fixed_abs, tag = 'smem constant byte address 0x4 - core index']
  #allocation1 [shape = 'u32[144,128]{1,0:T(1,128)}', space=vmem, size = 0x12000, scoped, tag = 'internal scratch']
  %s0 = inlined_call_operand.hbm [shape: f32[2,4,256], index: 0, kind: input, shape index: {}]
  %s1 = inlined_call_operand.vmem [shape: f32[4,36], index: 1, kind: input, shape index: {}]
  %s2 = inlined_call_operand.vmem [shape: f32[4,1], index: 2, kind: input, shape index: {}]
  %s3 = inlined_call_operand.hbm [shape: f32[2,2,4,256], index: 3, kind: output, shape index: {}]
  %s4 = sld [smem:[#allocation0]]
  $region49: #{tpu_custom_call.1} parent=0
    _
  %s6 = ssub.s32 1, %s4
  %s7 = scalar_select 0, %s6, %s4
  $region1: #{tpu_custom_call.1} parent=0
    #allocation2 [shape = 'u8[8192]{0}', space=vmem, size = 0x2000, scoped, tag = 'input window, operand 0']
    #allocation3 [shape = 's32[2]{0}', space=sflag, size = 0x8, scoped, tag = 'scoped memory for tpu_custom_call.1']
    #allocation4 [shape = 's32[2]{0}', space=sflag, size = 0x8, scoped, tag = 'scoped memory for tpu_custom_call.1']
    #allocation5 [shape = 'u8[16384]{0}', space=vmem, size = 0x4000, scoped, tag = 'output window, operand 0']
    %8 = vsyncpa [#allocation3], 0
    %s9 = scalar_lea.sflag [#allocation3], 1
    %10 = vsyncpa %s9, 0
    %11 = vsyncpa [#allocation4], 0
    %s12 = scalar_lea.sflag [#allocation4], 1
    %13 = vsyncpa %s12, 0
    loop: start=0, step=1, limit=4
    $region2: #{tpu_custom_call.1} parent=1 // loop_pre_header
      _
    $region3: #{tpu_custom_call.1} parent=1 // loop_header
      %s15 = sphi 0, %s19
      %p16 = scmp.ge.s32.totalorder %s15, 4
      %s25 = sphi 0, %s27
      %s28 = sphi 0, %s25
      %s29 = sphi 0, %s28
      %s45 = sphi 0, %s29
      %s49 = sphi 0, %s49
      %s51 = sphi 0, %s49
      %s52 = sphi 0, %s51
      %s66 = sphi 0, %s52
      %s70 = sphi 0, %s70
      %s72 = sphi 0, %s70
      %s73 = sphi 0, %s72
      %s87 = sphi 0, %s73
      %s93 = sphi 0, %s95
      %s96 = sphi 0, %s93
      %s97 = sphi 0, %s96
      %s113 = sphi 0, %s97
    $region4: #{tpu_custom_call.1} parent=1 // loop_header_branch
      %18 = sbr.rel (%p16) target = $region8
    $region5: #{tpu_custom_call.1} parent=1 // loop_body
      %s20 = ssub.s32 %s15, 1
      %s21 = ssub.s32 %s15, 2
      %s22 = sadd.s32 %s15, 1
      %s23 = ssub.s32 %s15, %s22
      %p24 = scmp.eq.s32.totalorder %s23, 0
      %s26 = sadd.s32 %s25, 1
      %s27 = scalar_select %p24, %s25, %s26
      %p30 = pneg %p24
      %p31 = scmp.eq.s32.totalorder %s15, 1
      %p32 = por %p30, %p31
      %p33 = scmp.ne.s32.totalorder %s25, %s28
      %p34 = scmp.eq.s32.totalorder %s15, 0
      %p35 = por %p33, %p34
      %p36 = scmp.ne.s32.totalorder %s25, %s28
      %p37 = scmp.eq.s32.totalorder %s20, 1
      %p38 = por %p36, %p37
      %p39 = scmp.ne.s32.totalorder %s28, %s29
      %p40 = scmp.eq.s32.totalorder %s20, 0
      %p41 = por %p39, %p40
      %p42 = scmp.ne.s32.totalorder %s28, %s29
      %p43 = scmp.eq.s32.totalorder %s21, 1
      %p44 = por %p42, %p43
      %p46 = scmp.ne.s32.totalorder %s29, %s45
      %p47 = scmp.eq.s32.totalorder %s21, 0
      %p48 = por %p46, %p47
      %s50 = sadd.s32 %s49, 1
      %p53 = scmp.eq.s32.totalorder %s15, 1
      %p54 = scmp.ne.s32.totalorder %s49, %s51
      %p55 = scmp.eq.s32.totalorder %s15, 0
      %p56 = por %p54, %p55
      %p57 = scmp.ne.s32.totalorder %s49, %s51
      %p58 = scmp.eq.s32.totalorder %s20, 1
      %p59 = por %p57, %p58
      %p60 = scmp.ne.s32.totalorder %s51, %s52
      %p61 = scmp.eq.s32.totalorder %s20, 0
      %p62 = por %p60, %p61
      %p63 = scmp.ne.s32.totalorder %s51, %s52
      %p64 = scmp.eq.s32.totalorder %s21, 1
      %p65 = por %p63, %p64
      %p67 = scmp.ne.s32.totalorder %s52, %s66
      %p68 = scmp.eq.s32.totalorder %s21, 0
      %p69 = por %p67, %p68
      %s71 = sadd.s32 %s70, 1
      %p74 = scmp.eq.s32.totalorder %s15, 1
      %p75 = scmp.ne.s32.totalorder %s70, %s72
      %p76 = scmp.eq.s32.totalorder %s15, 0
      %p77 = por %p75, %p76
      %p78 = scmp.ne.s32.totalorder %s70, %s72
      %p79 = scmp.eq.s32.totalorder %s20, 1
      %p80 = por %p78, %p79
      %p81 = scmp.ne.s32.totalorder %s72, %s73
      %p82 = scmp.eq.s32.totalorder %s20, 0
      %p83 = por %p81, %p82
      %p84 = scmp.ne.s32.totalorder %s72, %s73
      %p85 = scmp.eq.s32.totalorder %s21, 1
      %p86 = por %p84, %p85
      %p88 = scmp.ne.s32.totalorder %s73, %s87
      %p89 = scmp.eq.s32.totalorder %s21, 0
      %p90 = por %p88, %p89
      %s91 = ssub.s32 %s15, %s22
      %p92 = scmp.eq.s32.totalorder %s91, 0
      %s94 = sadd.s32 %s93, 1
      %s95 = scalar_select %p92, %s93, %s94
      %p98 = pneg %p92
      %p99 = scmp.eq.s32.totalorder %s15, 1
      %p100 = por %p98, %p99
      %p101 = scmp.ne.s32.totalorder %s93, %s96
      %p102 = scmp.eq.s32.totalorder %s15, 0
      %p103 = por %p101, %p102
      %p104 = scmp.ne.s32.totalorder %s93, %s96
      %p105 = scmp.eq.s32.totalorder %s20, 1
      %p106 = por %p104, %p105
      %p107 = scmp.ne.s32.totalorder %s96, %s97
      %p108 = scmp.eq.s32.totalorder %s20, 0
      %p109 = por %p107, %p108
      %p110 = scmp.ne.s32.totalorder %s96, %s97
      %p111 = scmp.eq.s32.totalorder %s21, 1
      %p112 = por %p110, %p111
      %p114 = scmp.ne.s32.totalorder %s97, %s113
      %p115 = scmp.eq.s32.totalorder %s21, 0
      %p116 = por %p114, %p115
      %p117 = scmp.le.s32.totalorder 1, %s15
      %p118 = scmp.lt.s32.totalorder %s15, 3
      %p119 = pnand %p117, %p118
      %p120 = pneg %p119
      // Predicated region
      $region9: #{tpu_custom_call.1} parent=5 // pred_check
        _
      $region10: #{tpu_custom_call.1} parent=5 // pred_check_branch
        %122 = sbr.rel (%p119) target = $region12
      $region11: #{tpu_custom_call.1} parent=5 // pred_region
        %s123 = ssub.s32 %s15, 1
        // Predicated region
        $region13: #{tpu_custom_call.1} parent=11 // pred_check
          %p124 = pneg %p62
        $region14: #{tpu_custom_call.1} parent=11 // pred_check_branch
          %126 = sbr.rel (%p124) target = $region16
        $region15: #{tpu_custom_call.1} parent=11 // pred_region
          _
        $region16: #{tpu_custom_call.1} parent=11 // pred_fallthru
          _
        // Predicated region
        $region17: #{tpu_custom_call.1} parent=11 // pred_check
          %p127 = pneg %p83
        $region18: #{tpu_custom_call.1} parent=11 // pred_check_branch
          %129 = sbr.rel (%p127) target = $region20
        $region19: #{tpu_custom_call.1} parent=11 // pred_region
          _
        $region20: #{tpu_custom_call.1} parent=11 // pred_fallthru
          _
      $region12: #{tpu_custom_call.1} parent=5 // pred_fallthru
        _
      %p130 = scmp.lt.s32.totalorder %s15, 2
      // Predicated region
      $region21: #{tpu_custom_call.1} parent=5 // pred_check
        %p131 = pneg %p130
      $region22: #{tpu_custom_call.1} parent=5 // pred_check_branch
        %133 = sbr.rel (%p131) target = $region24
      $region23: #{tpu_custom_call.1} parent=5 // pred_region
        // Predicated region
        $region25: #{tpu_custom_call.1} parent=23 // pred_check
          %p134 = pneg %p35
        $region26: #{tpu_custom_call.1} parent=23 // pred_check_branch
          %136 = sbr.rel (%p134) target = $region28
        $region27: #{tpu_custom_call.1} parent=23 // pred_region
          %s137 = sand.u32 %s25, 1
          %s138 = scalar_lea.sflag [#allocation3], %s137
          %s139 = sand.u32 %s25, 1
          %s140 = smul.addr %s139, 8
          %s141 = scalar_lea.vmem [#allocation2], %s140
          %s143 = ssub.s32 128, 128
          %144 = vsyncadd %s138, %s143
          %s145 = smul.addr %s15, 2
          %s146 = smul.addr %s145, 64
          %s147 = scalar_lea.hbm %s0, %s146
          %s149 = sshll.u32 %s141, 4
          %s150 = int_to_ptr.vmem [resolvable:$true] %s149
          %152 = dma.hbm_to_vmem [thread:$0]  %s147, 128, %s150, %s138
        $region28: #{tpu_custom_call.1} parent=23 // pred_fallthru
          _
      $region24: #{tpu_custom_call.1} parent=5 // pred_fallthru
        _
      %p153 = scmp.le.s32.totalorder 1, %s15
      %p154 = scmp.lt.s32.totalorder %s15, 3
      %p155 = pnand %p153, %p154
      %p156 = pneg %p155
      // Predicated region
      $region29: #{tpu_custom_call.1} parent=5 // pred_check
        _
      $region30: #{tpu_custom_call.1} parent=5 // pred_check_branch
        %158 = sbr.rel (%p155) target = $region32
      $region31: #{tpu_custom_call.1} parent=5 // pred_region
        %s159 = ssub.s32 %s15, 1
        %s160 = sand.u32 %s28, 1
        %s161 = scalar_lea.sflag [#allocation3], %s160
        %s162 = sand.u32 %s28, 1
        %s163 = smul.addr %s162, 8
        %s164 = scalar_lea.vmem [#allocation2], %s163
        // Predicated region
        $region33: #{tpu_custom_call.1} parent=31 // pred_check
          %p165 = pneg %p41
        $region34: #{tpu_custom_call.1} parent=31 // pred_check_branch
          %167 = sbr.rel (%p165) target = $region36
        $region35: #{tpu_custom_call.1} parent=31 // pred_region
          %168 = dma.done %s161, 128
        $region36: #{tpu_custom_call.1} parent=31 // pred_fallthru
          _
        %s169 = sand.u32 %s28, 1
        %s170 = scalar_lea.sflag [#allocation3], %s169
        %s171 = sand.u32 %s28, 1
        %s172 = smul.addr %s171, 8
        %s173 = scalar_lea.vmem [#allocation2], %s172
        %p174 = pneg %p41
        %p175 = pneg %p38
        %p176 = pneg %p62
        %p177 = pneg %p59
        %p178 = pneg %p83
        %p179 = pneg %p80
        %p180 = pneg %p109
        %p181 = pneg %p106
        %s182 = sand.u32 %s96, 1
        %s183 = scalar_lea.sflag [#allocation4], %s182
        %s184 = sand.u32 %s96, 1
        %s185 = smul.addr %s184, 16
        %s186 = scalar_lea.vmem [#allocation5], %s185
        %v187 = vld [vmem:[%s164] sm:$0xff]
        %v188 = vlaneseq
        %v189 = vand.u32 %v188, 127
        %v190 = vadd.s32 %v189, 128
        %v191 = vand.u32 %v189, 15
        %v192 = vand.u32 %v190, 15
        %vm193 = vcmp.ge.s32.totalorder %v189, 16
        %vm194 = vcmp.ge.s32.totalorder %v190, 16
        %vm195 = vcmp.lt.s32.totalorder %v189, 240
        %vm196 = vcmp.lt.s32.totalorder %v190, 240
        %vm197 = vcmp.ge.s32.totalorder %v191, 1
        %vm198 = vcmp.ge.s32.totalorder %v192, 1
        %vm199 = vcmp.le.s32.totalorder %v191, 14
        %vm200 = vcmp.le.s32.totalorder %v192, 14
        %vm201 = vmand %vm193, %vm197
        %vm202 = vmand %vm194, %vm198
        %v204 = vcombine.high %v187, %v187
        %206 = vrot.lane.b32.xlu0 %v187, 17
        %v207 = vpop.permute.xlu0 %206
        %208 = vrot.lane.b32.xlu0 %v204, 17
        %v209 = vpop.permute.xlu0 %208
        %vm210 = vcmp.lt.s32.totalorder %v189, 17
        %v211 = vsel %vm210, %v207, %v209
        %v212 = vsel %vm210, %v209, %v207
        %v213 = vsel %vm201, 1, 0
        %v214 = vsel %vm202, 1, 0
        %vm215 = vcmp.eq.s32.totalorder %v213, 1
        %vm216 = vcmp.eq.s32.totalorder %v214, 1
        %v217 = vsel %vm215, %v212, 0.0
        %v218 = vsel %vm216, %v211, 0.0
        %219 = vrot.lane.b32.xlu0 %v187, 16
        %v220 = vpop.permute.xlu0 %219
        %221 = vrot.lane.b32.xlu0 %v204, 16
        %v222 = vpop.permute.xlu0 %221
        %vm223 = vcmp.lt.s32.totalorder %v189, 16
        %v224 = vsel %vm223, %v220, %v222
        %v225 = vsel %vm223, %v222, %v220
        %v226 = vsel %vm193, 1, 0
        %v227 = vsel %vm194, 1, 0
        %vm228 = vcmp.eq.s32.totalorder %v226, 1
        %vm229 = vcmp.eq.s32.totalorder %v227, 1
        %v230 = vsel %vm228, %v225, 0.0
        %v231 = vsel %vm229, %v224, 0.0
        %vm232 = vmand %vm193, %vm199
        %vm233 = vmand %vm194, %vm200
        %234 = vrot.lane.b32.xlu0 %v187, 15
        %v235 = vpop.permute.xlu0 %234
        %236 = vrot.lane.b32.xlu0 %v204, 15
        %v237 = vpop.permute.xlu0 %236
        %vm238 = vcmp.lt.s32.totalorder %v189, 15
        %v239 = vsel %vm238, %v235, %v237
        %v240 = vsel %vm238, %v237, %v235
        %v241 = vsel %vm232, 1, 0
        %v242 = vsel %vm233, 1, 0
        %vm243 = vcmp.eq.s32.totalorder %v241, 1
        %vm244 = vcmp.eq.s32.totalorder %v242, 1
        %v245 = vsel %vm243, %v240, 0.0
        %v246 = vsel %vm244, %v239, 0.0
        %247 = vrot.lane.b32.xlu0 %v187, 1
        %v248 = vpop.permute.xlu0 %247
        %249 = vrot.lane.b32.xlu0 %v204, 1
        %v250 = vpop.permute.xlu0 %249
        %vm251 = vcmp.lt.s32.totalorder %v189, 1
        %v252 = vsel %vm251, %v248, %v250
        %v253 = vsel %vm251, %v250, %v248
        %v254 = vsel %vm197, 1, 0
        %v255 = vsel %vm198, 1, 0
        %vm256 = vcmp.eq.s32.totalorder %v254, 1
        %vm257 = vcmp.eq.s32.totalorder %v255, 1
        %v258 = vsel %vm256, %v253, 0.0
        %v259 = vsel %vm257, %v252, 0.0
        %260 = vrot.lane.b32.xlu0 %v187, 127
        %v261 = vpop.permute.xlu0 %260
        %262 = vrot.lane.b32.xlu0 %v204, 127
        %v263 = vpop.permute.xlu0 %262
        %vm264 = vcmp.lt.s32.totalorder %v189, 127
        %v265 = vsel %vm264, %v261, %v263
        %v266 = vsel %vm264, %v263, %v261
        %v267 = vsel %vm199, 1, 0
        %v268 = vsel %vm200, 1, 0
        %vm269 = vcmp.eq.s32.totalorder %v267, 1
        %vm270 = vcmp.eq.s32.totalorder %v268, 1
        %v271 = vsel %vm269, %v265, 0.0
        %v272 = vsel %vm270, %v266, 0.0
        %vm273 = vmand %vm195, %vm197
        %vm274 = vmand %vm196, %vm198
        %275 = vrot.lane.b32.xlu0 %v187, 113
        %v276 = vpop.permute.xlu0 %275
        %277 = vrot.lane.b32.xlu0 %v204, 113
        %v278 = vpop.permute.xlu0 %277
        %vm279 = vcmp.lt.s32.totalorder %v189, 113
        %v280 = vsel %vm279, %v276, %v278
        %v281 = vsel %vm279, %v278, %v276
        %v282 = vsel %vm273, 1, 0
        %v283 = vsel %vm274, 1, 0
        %vm284 = vcmp.eq.s32.totalorder %v282, 1
        %vm285 = vcmp.eq.s32.totalorder %v283, 1
        %v286 = vsel %vm284, %v280, 0.0
        %v287 = vsel %vm285, %v281, 0.0
        %288 = vrot.lane.b32.xlu0 %v187, 112
        %v289 = vpop.permute.xlu0 %288
        %290 = vrot.lane.b32.xlu0 %v204, 112
        %v291 = vpop.permute.xlu0 %290
        %vm292 = vcmp.lt.s32.totalorder %v189, 112
        %v293 = vsel %vm292, %v289, %v291
        %v294 = vsel %vm292, %v291, %v289
        %v295 = vsel %vm195, 1, 0
        %v296 = vsel %vm196, 1, 0
        %vm297 = vcmp.eq.s32.totalorder %v295, 1
        %vm298 = vcmp.eq.s32.totalorder %v296, 1
        %v299 = vsel %vm297, %v293, 0.0
        %v300 = vsel %vm298, %v294, 0.0
        %vm301 = vmand %vm195, %vm199
        %vm302 = vmand %vm196, %vm200
        %303 = vrot.lane.b32.xlu0 %v187, 111
        %v304 = vpop.permute.xlu0 %303
        %305 = vrot.lane.b32.xlu0 %v204, 111
        %v306 = vpop.permute.xlu0 %305
        %vm307 = vcmp.lt.s32.totalorder %v189, 111
        %v308 = vsel %vm307, %v304, %v306
        %v309 = vsel %vm307, %v306, %v304
        %v310 = vsel %vm301, 1, 0
        %v311 = vsel %vm302, 1, 0
        %vm312 = vcmp.eq.s32.totalorder %v310, 1
        %vm313 = vcmp.eq.s32.totalorder %v311, 1
        %v314 = vsel %vm312, %v308, 0.0
        %v315 = vsel %vm313, %v309, 0.0
        %v318 = vrot.slane %v230, 4
        %v319 = vrot.slane %v231, 4
        %v324 = vrot.slane %v258, 4
        %v325 = vrot.slane %v259, 4
        %v330 = vrot.slane %v271, 4
        %v331 = vrot.slane %v272, 4
        %v336 = vrot.slane %v299, 4
        %v337 = vrot.slane %v300, 4
        %vm340 = vcmask 1043456
        %v341 = vsel %vm340, %v217, %v318
        %v342 = vsel %vm340, %v218, %v319
        %v343 = vsel %vm340, %v245, %v324
        %v344 = vsel %vm340, %v246, %v325
        %v345 = vsel %vm340, %v187, %v330
        %v346 = vsel %vm340, %v204, %v331
        %v347 = vsel %vm340, %v286, %v336
        %v348 = vsel %vm340, %v287, %v337
        %v349 = vld [vmem:[%s1] sm:$0xf]
        %v350 = vld [vmem:[%s2] sm:$0xf]
        %352 = vset.pattern.permute.xlu0 0
        %353 = vperm.xlu0 %352, %v350
        %v354 = vpop.permute.xlu0 %353
        %vm356 = vcmask 293888
        %v358 = vsel %vm356, %v349, 0
        %v361 = vsel %vm340, %v314, 0
        %v364 = vsel %vm340, %v315, 0
        %366 = vmatprep.subr.mxu0 %v342
        %367 = vmatpush1.msra.mxu0 %v341
        %368 = vmatprep.subr.mxu0 %v344
        %369 = vmatpush1.msra.mxu0 %v343
        %370 = vmatprep.subr.mxu0 %v346
        %371 = vmatpush1.msra.mxu0 %v345
        %372 = vmatprep.subr.mxu0 %v348
        %373 = vmatpush1.msra.mxu0 %v347
        %374 = vmatprep.subr.mxu0 %v364
        %375 = vmatpush1.msra.mxu0 %v361
        %376 = vmatprep.subr.mxu0 0.0
        %377 = vmatpush1.msra.mxu0 0.0
        %378 = vmatprep.subr.mxu0 0.0
        %379 = vmatpush1.msra.mxu0 0.0
        %380 = vmatprep.subr.mxu0 0.0
        %381 = vmatpush1.msra.mxu0 0.0
        %382 = vmatprep.subr.mxu0 0.0
        %383 = vmatpush1.msra.mxu0 0.0
        %384 = vmatprep.subr.mxu0 0.0
        %385 = vmatpush1.msra.mxu0 0.0
        %386 = vmatprep.subr.mxu0 0.0
        %387 = vmatpush1.msra.mxu0 0.0
        %388 = vmatprep.subr.mxu0 0.0
        %389 = vmatpush1.msra.mxu0 0.0
        %390 = vmatprep.subr.mxu0 0.0
        %391 = vmatpush1.msra.mxu0 0.0
        %392 = vmatprep.subr.mxu0 0.0
        %393 = vmatpush1.msra.mxu0 0.0
        %394 = vmatprep.subr.mxu0 0.0
        %395 = vmatpush1.msra.mxu0 0.0
        %396 = vmatprep.subr.mxu0 0.0
        %397 = vmatpush1.msra.mxu0 0.0
        %398 = vmatprep.subr.mxu0 0.0
        %399 = vmatpush1.msra.mxu0 0.0
        %400 = vmatprep.subr.mxu0 0.0
        %401 = vmatpush1.msra.mxu0 0.0
        %402 = vmatprep.subr.mxu0 0.0
        %403 = vmatpush1.msra.mxu0 0.0
        %404 = vmatprep.subr.mxu0 0.0
        %405 = vmatpush1.msra.mxu0 0.0
        %406 = vmatprep.subr.mxu0 0.0
        %407 = vmatpush1.msra.mxu0 0.0
        %408 = vmatprep.subr.mxu0 0.0
        %409 = vmatpush1.msra.mxu0 0.0
        %410 = vmatprep.subr.mxu0 0.0
        %411 = vmatpush1.msra.mxu0 0.0
        %412 = vmatprep.subr.mxu0 0.0
        %413 = vmatpush1.msra.mxu0 0.0
        %414 = vmatprep.subr.mxu0 0.0
        %415 = vmatpush1.msra.mxu0 0.0
        %416 = vmatprep.subr.mxu0 0.0
        %417 = vmatpush1.msra.mxu0 0.0
        %418 = vmatprep.subr.mxu0 0.0
        %419 = vmatpush1.msra.mxu0 0.0
        %420 = vmatprep.subr.mxu0 0.0
        %421 = vmatpush1.msra.mxu0 0.0
        %422 = vmatprep.subr.mxu0 0.0
        %423 = vmatpush1.msra.mxu0 0.0
        %424 = vmatprep.subr.mxu0 0.0
        %425 = vmatpush1.msra.mxu0 0.0
        %426 = vmatprep.subr.mxu0 0.0
        %427 = vmatpush1.msra.mxu0 0.0
        %428 = vmatprep.subr.mxu0 0.0
        %429 = vmatpush1.msra.mxu0 0.0
        %430 = vmatprep.mubr.f32.mxu0 0.0
        %431 = vmatmul.mubr.f32.gmra.mrb[0].mxu0 %v358
        %v432 = vpop.f32.mrb[0].mxu0
        %v433 = vadd.f32 %v354, %v432
        %v434 = vpop.f32.mrb[0].mxu0
        %v435 = vadd.f32 %v354, %v434
        %436 = vdwg.mxu0
        %v439 = vcombine.low %v433, %v435
        %441 = vst [vmem:[%s186] sm:$0xff] %v439
        %s442 = scalar_lea.vmem %s186, 8 [#allocation5]
        %443 = vst [vmem:[%s442] sm:$0xff] %v187
        %s444 = sand.u32 %s96, 1
        %s445 = scalar_lea.sflag [#allocation4], %s444
        %s446 = sand.u32 %s96, 1
        %s447 = smul.addr %s446, 16
        %s448 = scalar_lea.vmem [#allocation5], %s447
        // Predicated region
        $region37: #{tpu_custom_call.1} parent=31 // pred_check
          %p449 = pneg %p106
        $region38: #{tpu_custom_call.1} parent=31 // pred_check_branch
          %451 = sbr.rel (%p449) target = $region40
        $region39: #{tpu_custom_call.1} parent=31 // pred_region
          %s453 = ssub.s32 256, 256
          %454 = vsyncadd %s445, %s453
          %s455 = smul.addr %s20, 4
          %s456 = smul.addr %s455, 64
          %s457 = scalar_lea.hbm %s3, %s456
          %s458 = sshll.u32 %s448, 4
          %s459 = int_to_ptr.vmem [resolvable:$true] %s458
          %464 = dma.vmem_to_hbm [thread:$0]  %s459, 256, %s457, %s445, 128, 128, 8
        $region40: #{tpu_custom_call.1} parent=31 // pred_fallthru
          _
      $region32: #{tpu_custom_call.1} parent=5 // pred_fallthru
        _
      %p465 = scmp.le.s32.totalorder 2, %s15
      // Predicated region
      $region41: #{tpu_custom_call.1} parent=5 // pred_check
        %p466 = pneg %p465
      $region42: #{tpu_custom_call.1} parent=5 // pred_check_branch
        %468 = sbr.rel (%p466) target = $region44
      $region43: #{tpu_custom_call.1} parent=5 // pred_region
        %s469 = ssub.s32 %s15, 2
        // Predicated region
        $region45: #{tpu_custom_call.1} parent=43 // pred_check
          %p470 = pneg %p112
        $region46: #{tpu_custom_call.1} parent=43 // pred_check_branch
          %472 = sbr.rel (%p470) target = $region48
        $region47: #{tpu_custom_call.1} parent=43 // pred_region
          %s473 = sand.u32 %s97, 1
          %s474 = scalar_lea.sflag [#allocation4], %s473
          %s475 = sand.u32 %s97, 1
          %s476 = smul.addr %s475, 16
          %s477 = scalar_lea.vmem [#allocation5], %s476
          %478 = dma.done %s474, 256
        $region48: #{tpu_custom_call.1} parent=43 // pred_fallthru
          _
      $region44: #{tpu_custom_call.1} parent=5 // pred_fallthru
        _
    $region6: #{tpu_custom_call.1} parent=1 // loop_footer
      %s19 = sadd.s32 1, %s15
    $region7: #{tpu_custom_call.1} parent=1 // loop_footer_branch
      %14 = sbr.rel target = $region3
    $region8: #{tpu_custom_call.1} parent=1 // loop_exit
      _
    %479 = vsyncpa [#allocation3], 1
    %s480 = scalar_lea.sflag [#allocation3], 1
    %481 = vsyncpa %s480, 1
    %482 = vsyncpa [#allocation4], 1
    %s483 = scalar_lea.sflag [#allocation4], 1
    %484 = vsyncpa %s483, 1

</llo_original>
